<compile_context>
chip_gen: v7x
topology: tpu7x:2x2x1
jax: 0.10.0
libtpu: 0.0.40
codegen_flags: <defaults>
</compile_context>

<pallas_src>
import jax
import jax.numpy as jnp
from jax.experimental import pallas as pl
from jax.experimental.pallas import tpu as pltpu

SUBLANE = 8
LANE = 128
TILE_B_CAP = 4096  # sweep 2048-8192; 4096 keeps grid >= 2 for batch > 4096


def _round_up(x, m):
    return ((x + m - 1) // m) * m


def mlp_kernel(obs_ref, w1_ref, b1_ref, w2_ref, b2_ref, out_ref):
    """Fused 2-layer MLP, transposed (features on sublanes, batch on lanes):
         out_t = W2_t @ relu(W1_t @ obs_t + b1_t) + b2_t
       Both matmuls run on the MXU; VPU only does bias-add + ReLU."""
    x_t = obs_ref[...]                                   # (in_p, TILE_B)

    # Layer 1 (MXU): (hidden_p, in_p) @ (in_p, TILE_B) -> (hidden_p, TILE_B)
    h_t = jnp.dot(w1_ref[...], x_t,
                  preferred_element_type=jnp.float32,
                  precision=jax.lax.Precision.HIGHEST)
    h_t = jnp.maximum(h_t + b1_ref[...], 0.0)            # bias + ReLU (VPU)

    # Layer 2 (MXU): (out_p, hidden_p) @ (hidden_p, TILE_B) -> (out_p, TILE_B)
    y_t = jnp.dot(w2_ref[...], h_t,
                  preferred_element_type=jnp.float32,
                  precision=jax.lax.Precision.HIGHEST) + b2_ref[...]

    out_ref[...] = y_t.astype(out_ref.dtype)


def state_to_action_logits(obs, w1, b1, w2, b2):
    """obs: (batch, in_f); w1: (in_f, hidden); b1: (1, hidden);
       w2: (hidden, out_f); b2: (1, out_f).  Returns (batch, out_f) logits."""
    batch, in_f = obs.shape
    hidden = w1.shape[1]
    out_f = w2.shape[1]

    # Sublane-granule padding only (features live on sublanes now).
    in_p = _round_up(in_f, SUBLANE)        # 4  -> 8
    hidden_p = _round_up(hidden, SUBLANE)  # 10 -> 16
    out_p = _round_up(out_f, SUBLANE)      # 2  -> 8

    # Transposed, zero-padded parameters (zero rows/cols + zero bias keep the
    # sliced result identical to the unpadded computation).
    w1t = jnp.zeros((hidden_p, in_p), jnp.float32).at[:hidden, :in_f].set(w1.T)
    b1t = jnp.zeros((hidden_p, 1), jnp.float32).at[:hidden, 0].set(b1.reshape(-1))
    w2t = jnp.zeros((out_p, hidden_p), jnp.float32).at[:out_f, :hidden].set(w2.T)
    b2t = jnp.zeros((out_p, 1), jnp.float32).at[:out_f, 0].set(b2.reshape(-1))

    # Batch tiling: batch sits on the lane axis, so tiles are multiples of 128.
    b128 = _round_up(batch, LANE)
    tile_b = b128 if b128 <= TILE_B_CAP else TILE_B_CAP
    padded_batch = _round_up(batch, tile_b)

    # Single materialization: transpose + feature-pad + batch-pad of obs.
    obs_t = jnp.zeros((in_p, padded_batch), jnp.float32).at[:in_f, :batch].set(obs.T)

    grid = (padded_batch // tile_b,)

    out_t = pl.pallas_call(
        mlp_kernel,
        out_shape=jax.ShapeDtypeStruct((out_p, padded_batch), jnp.float32),
        grid=grid,
        in_specs=[
            pl.BlockSpec((in_p, tile_b), lambda i: (0, i)),      # obs_t: batch-tiled
            pl.BlockSpec((hidden_p, in_p), lambda i: (0, 0)),    # W1_t: VMEM-resident
            pl.BlockSpec((hidden_p, 1), lambda i: (0, 0)),       # b1_t: VMEM-resident
            pl.BlockSpec((out_p, hidden_p), lambda i: (0, 0)),   # W2_t: VMEM-resident
            pl.BlockSpec((out_p, 1), lambda i: (0, 0)),          # b2_t: VMEM-resident
        ],
        out_specs=pl.BlockSpec((out_p, tile_b), lambda i: (0, i)),  # lane-dense store
        compiler_params=pltpu.CompilerParams(
            dimension_semantics=("parallel",)),                  # both v7x TCs
    )(obs_t, w1t, b1t, w2t, b2t)

    # Slice away padded feature sublanes / batch lanes, return (batch, out_f).
    return out_t[:out_f, :batch].T


def init_params(key, in_features, hidden_features, out_features):
    """Deterministic init mimicking torch.nn.Linear (uniform +/- 1/sqrt(fan_in))."""
    k1, k2, k3, k4 = jax.random.split(key, 4)
    lim1 = 1.0 / jnp.sqrt(jnp.float32(in_features))
    lim2 = 1.0 / jnp.sqrt(jnp.float32(hidden_features))
    w1 = jax.random.uniform(k1, (in_features, hidden_features), jnp.float32,
                            minval=-lim1, maxval=lim1)
    b1 = jax.random.uniform(k2, (1, hidden_features), jnp.float32,
                            minval=-lim1, maxval=lim1)
    w2 = jax.random.uniform(k3, (hidden_features, out_features), jnp.float32,
                            minval=-lim2, maxval=lim2)
    b2 = jax.random.uniform(k4, (1, out_features), jnp.float32,
                            minval=-lim2, maxval=lim2)
    return w1, b1, w2, b2


if __name__ == "__main__":
    # CartPole-style shapes: observation dim 4, 2 actions, hidden 10 (from module).
    batch = 8
    in_features = 4
    hidden_features = 10
    out_features = 2

    key = jax.random.PRNGKey(0)
    k_obs, k_params = jax.random.split(key)
    obs = jax.random.normal(k_obs, (batch, in_features), jnp.float32)
    w1, b1, w2, b2 = init_params(k_params, in_features, hidden_features, out_features)

    logits = state_to_action_logits(obs, w1, b1, w2, b2)
    logits = jax.block_until_ready(logits)

    # Pure-JAX reference with matching (f32-accurate) matmul precision.
    hp = jax.lax.Precision.HIGHEST
    h_ref = jnp.maximum(jnp.dot(obs, w1, precision=hp) + b1, 0.0)
    ref = jnp.dot(h_ref, w2, precision=hp) + b2

    assert logits.shape == (batch, out_features)
    assert jnp.allclose(logits, ref, atol=1e-5, rtol=1e-5)

    print("KERNEL_OK")
</pallas_src>

<mosaic_0001>
module attributes {stable_mosaic.version = 11 : i64} {
  func.func @mlp_kernel(%arg0: i32, %arg1: memref<8x128xf32, #tpu.memory_space<vmem>>, %arg2: memref<16x8xf32, #tpu.memory_space<vmem>>, %arg3: memref<16x1xf32, #tpu.memory_space<vmem>>, %arg4: memref<8x16xf32, #tpu.memory_space<vmem>>, %arg5: memref<8x1xf32, #tpu.memory_space<vmem>>, %arg6: memref<8x128xf32, #tpu.memory_space<vmem>>) attributes {dimension_semantics = [#tpu.dimension_semantics<parallel>], iteration_bounds = array<i64: 1>, scalar_prefetch = 0 : i64, scratch_operands = 0 : i64, tpu.core_type = #tpu.core_type<tc>, window_params = [{transform_indices = @transform_0, window_bounds = array<i64: 8, 128>}, {pipeline_mode = #tpu.pipeline_mode<synchronous>, transform_indices = @transform_1, window_bounds = array<i64: 16, 8>}, {pipeline_mode = #tpu.pipeline_mode<synchronous>, transform_indices = @transform_2, window_bounds = array<i64: 16, 1>}, {pipeline_mode = #tpu.pipeline_mode<synchronous>, transform_indices = @transform_3, window_bounds = array<i64: 8, 16>}, {pipeline_mode = #tpu.pipeline_mode<synchronous>, transform_indices = @transform_4, window_bounds = array<i64: 8, 1>}, {transform_indices = @transform_5, window_bounds = array<i64: 8, 128>}]} {
    %c0 = arith.constant 0 : index
    %c0_0 = arith.constant 0 : index
    %0 = vector.load %arg1[%c0, %c0_0] : memref<8x128xf32, #tpu.memory_space<vmem>>, vector<8x128xf32>
    %c0_1 = arith.constant 0 : index
    %c0_2 = arith.constant 0 : index
    %1 = vector.load %arg2[%c0_1, %c0_2] : memref<16x8xf32, #tpu.memory_space<vmem>>, vector<16x8xf32>
    %cst = arith.constant dense<0.000000e+00> : vector<16x128xf32>
    %2 = tpu.matmul %1, %0, %cst {dimension_numbers = #tpu.dot_dimension_numbers<[1], [0], [0], [1], [0, 0, 1, 1], [], []>, precision = #tpu.contract_precision<fp32>} : vector<16x8xf32>, vector<8x128xf32>, vector<16x128xf32> -> vector<16x128xf32>
    %c0_3 = arith.constant 0 : index
    %c0_4 = arith.constant 0 : index
    %3 = vector.load %arg3[%c0_3, %c0_4] : memref<16x1xf32, #tpu.memory_space<vmem>>, vector<16x1xf32>
    %4 = vector.broadcast %3 : vector<16x1xf32> to vector<16x128xf32>
    %5 = arith.addf %2, %4 : vector<16x128xf32>
    %cst_5 = arith.constant 0.000000e+00 : f32
    %6 = vector.broadcast %cst_5 : f32 to vector<16x128xf32>
    %7 = arith.maximumf %5, %6 : vector<16x128xf32>
    %c0_6 = arith.constant 0 : index
    %c0_7 = arith.constant 0 : index
    %8 = vector.load %arg4[%c0_6, %c0_7] : memref<8x16xf32, #tpu.memory_space<vmem>>, vector<8x16xf32>
    %cst_8 = arith.constant dense<0.000000e+00> : vector<8x128xf32>
    %9 = tpu.matmul %8, %7, %cst_8 {dimension_numbers = #tpu.dot_dimension_numbers<[1], [0], [0], [1], [0, 0, 1, 1], [], []>, precision = #tpu.contract_precision<fp32>} : vector<8x16xf32>, vector<16x128xf32>, vector<8x128xf32> -> vector<8x128xf32>
    %c0_9 = arith.constant 0 : index
    %c0_10 = arith.constant 0 : index
    %10 = vector.load %arg5[%c0_9, %c0_10] : memref<8x1xf32, #tpu.memory_space<vmem>>, vector<8x1xf32>
    %11 = vector.broadcast %10 : vector<8x1xf32> to vector<8x128xf32>
    %12 = arith.addf %9, %11 : vector<8x128xf32>
    %c0_11 = arith.constant 0 : index
    %c0_12 = arith.constant 0 : index
    %13 = vector.load %arg6[%c0_11, %c0_12] : memref<8x128xf32, #tpu.memory_space<vmem>>, vector<8x128xf32>
    tpu.vector_store %arg6[%c0_11, %c0_12], %12 {strides = array<i32>} : memref<8x128xf32, #tpu.memory_space<vmem>>, vector<8x128xf32>,
    return
  }
  func.func @transform_0(%arg0: i32) -> (i32, i32) {
    %c0_i32 = arith.constant 0 : i32
    %c0_i32_0 = arith.constant 0 : i32
    return %c0_i32, %arg0 : i32, i32
  }
  func.func @transform_1(%arg0: i32) -> (i32, i32) {
    %c0_i32 = arith.constant 0 : i32
    %c0_i32_0 = arith.constant 0 : i32
    %c0_i32_1 = arith.constant 0 : i32
    return %c0_i32, %c0_i32_0 : i32, i32
  }
  func.func @transform_2(%arg0: i32) -> (i32, i32) {
    %c0_i32 = arith.constant 0 : i32
    %c0_i32_0 = arith.constant 0 : i32
    %c0_i32_1 = arith.constant 0 : i32
    return %c0_i32, %c0_i32_0 : i32, i32
  }
  func.func @transform_3(%arg0: i32) -> (i32, i32) {
    %c0_i32 = arith.constant 0 : i32
    %c0_i32_0 = arith.constant 0 : i32
    %c0_i32_1 = arith.constant 0 : i32
    return %c0_i32, %c0_i32_0 : i32, i32
  }
  func.func @transform_4(%arg0: i32) -> (i32, i32) {
    %c0_i32 = arith.constant 0 : i32
    %c0_i32_0 = arith.constant 0 : i32
    %c0_i32_1 = arith.constant 0 : i32
    return %c0_i32, %c0_i32_0 : i32, i32
  }
  func.func @transform_5(%arg0: i32) -> (i32, i32) {
    %c0_i32 = arith.constant 0 : i32
    %c0_i32_0 = arith.constant 0 : i32
    return %c0_i32, %arg0 : i32, i32
  }
}

</mosaic_0001>

<llo_original>
// kernel: tpu_custom_call.1
$region0: #{tpu_custom_call.1}
  #allocation0 [shape = 'u32[]', space=smem, size = 0x4, offset = 0x4, fixed_abs, tag = 'smem constant byte address 0x4 - core index']
  #allocation1 [shape = 'u32[144,128]{1,0:T(1,128)}', space=vmem, size = 0x12000, scoped, tag = 'internal scratch']
  %s0 = inlined_call_operand.vmem [shape: f32[8,128], index: 0, kind: input, shape index: {}]
  %s1 = inlined_call_operand.vmem [shape: f32[16,8], index: 1, kind: input, shape index: {}]
  %s2 = inlined_call_operand.vmem [shape: f32[16,1], index: 2, kind: input, shape index: {}]
  %s3 = inlined_call_operand.vmem [shape: f32[8,16], index: 3, kind: input, shape index: {}]
  %s4 = inlined_call_operand.vmem [shape: f32[8,1], index: 4, kind: input, shape index: {}]
  %s5 = inlined_call_operand.hbm [shape: f32[8,128], index: 5, kind: output, shape index: {}]
  %s6 = sld [smem:[#allocation0]]
  $region30: #{tpu_custom_call.1} parent=0
    _
  %s8 = ssub.s32 1, %s6
  %s9 = scalar_select 0, %s8, %s6
  $region1: #{tpu_custom_call.1} parent=0
    #allocation2 [shape = 'u8[4096]{0}', space=vmem, size = 0x1000, scoped, tag = 'output window, operand 0, single buffered']
    #allocation3 [shape = 's32[1]{0}', space=sflag, size = 0x4, scoped, tag = 'scoped memory for tpu_custom_call.1']
    %10 = vsyncpa [#allocation3], 0
    // Predicated region
    $region2: #{tpu_custom_call.1} parent=1 // pred_check
      _
    $region3: #{tpu_custom_call.1} parent=1 // pred_check_branch
      %12 = sbr.rel (0) target = $region5
    $region4: #{tpu_custom_call.1} parent=1 // pred_region
      _
    $region5: #{tpu_custom_call.1} parent=1 // pred_fallthru
      _
    // Predicated region
    $region6: #{tpu_custom_call.1} parent=1 // pred_check
      _
    $region7: #{tpu_custom_call.1} parent=1 // pred_check_branch
      %14 = sbr.rel (0) target = $region9
    $region8: #{tpu_custom_call.1} parent=1 // pred_region
      _
    $region9: #{tpu_custom_call.1} parent=1 // pred_fallthru
      _
    // Predicated region
    $region10: #{tpu_custom_call.1} parent=1 // pred_check
      _
    $region11: #{tpu_custom_call.1} parent=1 // pred_check_branch
      %16 = sbr.rel (0) target = $region13
    $region12: #{tpu_custom_call.1} parent=1 // pred_region
      _
    $region13: #{tpu_custom_call.1} parent=1 // pred_fallthru
      _
    // Predicated region
    $region14: #{tpu_custom_call.1} parent=1 // pred_check
      _
    $region15: #{tpu_custom_call.1} parent=1 // pred_check_branch
      %18 = sbr.rel (0) target = $region17
    $region16: #{tpu_custom_call.1} parent=1 // pred_region
      _
    $region17: #{tpu_custom_call.1} parent=1 // pred_fallthru
      _
    // Predicated region
    $region18: #{tpu_custom_call.1} parent=1 // pred_check
      _
    $region19: #{tpu_custom_call.1} parent=1 // pred_check_branch
      %20 = sbr.rel (0) target = $region21
    $region20: #{tpu_custom_call.1} parent=1 // pred_region
      _
    $region21: #{tpu_custom_call.1} parent=1 // pred_fallthru
      _
    %v21 = vld [vmem:[%s0] sm:$0xff]
    %v22 = vld [vmem:[%s1] sm:$0xff]
    %v23 = vld [vmem:[%s1 + $0x8] sm:$0xff]
    %v24 = vld [vmem:[%s2] sm:$0xff]
    %v25 = vld [vmem:[%s2 + $0x8] sm:$0xff]
    %27 = vset.pattern.permute.xlu0 0
    %28 = vperm.xlu0 %27, %v24
    %v29 = vpop.permute.xlu0 %28
    %32 = vset.pattern.permute.xlu0 0
    %33 = vperm.xlu0 %32, %v25
    %v34 = vpop.permute.xlu0 %33
    %vm36 = vcmask 64512
    %v38 = vsel %vm36, %v22, 0
    %v41 = vsel %vm36, %v23, 0
    %43 = vmatprep.subr.mxu0 0.0
    %v44 = vand.u32 %v21, 4294901760
    %45 = vmatpush1.msra.mxu0 %v44
    %46 = vmatprep.subr.mxu0 0.0
    %47 = vmatpush1.msra.mxu0 0.0
    %48 = vmatprep.subr.mxu0 0.0
    %49 = vmatpush1.msra.mxu0 0.0
    %50 = vmatprep.subr.mxu0 0.0
    %51 = vmatpush1.msra.mxu0 0.0
    %52 = vmatprep.subr.mxu0 0.0
    %53 = vmatpush1.msra.mxu0 0.0
    %54 = vmatprep.subr.mxu0 0.0
    %55 = vmatpush1.msra.mxu0 0.0
    %56 = vmatprep.subr.mxu0 0.0
    %57 = vmatpush1.msra.mxu0 0.0
    %58 = vmatprep.subr.mxu0 0.0
    %59 = vmatpush1.msra.mxu0 0.0
    %60 = vmatprep.subr.mxu0 0.0
    %61 = vmatpush1.msra.mxu0 0.0
    %62 = vmatprep.subr.mxu0 0.0
    %63 = vmatpush1.msra.mxu0 0.0
    %64 = vmatprep.subr.mxu0 0.0
    %65 = vmatpush1.msra.mxu0 0.0
    %66 = vmatprep.subr.mxu0 0.0
    %67 = vmatpush1.msra.mxu0 0.0
    %68 = vmatprep.subr.mxu0 0.0
    %69 = vmatpush1.msra.mxu0 0.0
    %70 = vmatprep.subr.mxu0 0.0
    %71 = vmatpush1.msra.mxu0 0.0
    %72 = vmatprep.subr.mxu0 0.0
    %73 = vmatpush1.msra.mxu0 0.0
    %74 = vmatprep.subr.mxu0 0.0
    %75 = vmatpush1.msra.mxu0 0.0
    %76 = vmatprep.subr.mxu0 0.0
    %77 = vmatpush1.msra.mxu0 0.0
    %78 = vmatprep.subr.mxu0 0.0
    %79 = vmatpush1.msra.mxu0 0.0
    %80 = vmatprep.subr.mxu0 0.0
    %81 = vmatpush1.msra.mxu0 0.0
    %82 = vmatprep.subr.mxu0 0.0
    %83 = vmatpush1.msra.mxu0 0.0
    %84 = vmatprep.subr.mxu0 0.0
    %85 = vmatpush1.msra.mxu0 0.0
    %86 = vmatprep.subr.mxu0 0.0
    %87 = vmatpush1.msra.mxu0 0.0
    %88 = vmatprep.subr.mxu0 0.0
    %89 = vmatpush1.msra.mxu0 0.0
    %90 = vmatprep.subr.mxu0 0.0
    %91 = vmatpush1.msra.mxu0 0.0
    %92 = vmatprep.subr.mxu0 0.0
    %93 = vmatpush1.msra.mxu0 0.0
    %94 = vmatprep.subr.mxu0 0.0
    %95 = vmatpush1.msra.mxu0 0.0
    %96 = vmatprep.subr.mxu0 0.0
    %97 = vmatpush1.msra.mxu0 0.0
    %98 = vmatprep.subr.mxu0 0.0
    %99 = vmatpush1.msra.mxu0 0.0
    %100 = vmatprep.subr.mxu0 0.0
    %101 = vmatpush1.msra.mxu0 0.0
    %102 = vmatprep.subr.mxu0 0.0
    %103 = vmatpush1.msra.mxu0 0.0
    %104 = vmatprep.subr.mxu0 0.0
    %105 = vmatpush1.msra.mxu0 0.0
    %106 = vmatprep.subr.mxu0 0.0
    %107 = vmatpush1.msra.mxu0 0.0
    %108 = vmatprep.mubr.f32.mxu0 0.0
    %v109 = vand.u32 %v38, 4294901760
    %v110 = vsub.f32 %v38, %v109
    %v111 = vand.u32 %v110, 4294901760
    %v112 = vsub.f32 %v110, %v111
    %v113 = vand.u32 %v112, 4294901760
    %114 = vmatmul.mubr.f32.gmra.mrb[0].mxu0 %v113
    %v115 = vpop.f32.mrb[0].mxu0
    %v116 = vadd.f32 %v29, %v115
    %v117 = vpop.f32.mrb[0].mxu0
    %118 = vmatprep.mubr.f32.mxu0 0.0
    %v119 = vand.u32 %v41, 4294901760
    %v120 = vsub.f32 %v41, %v119
    %v121 = vand.u32 %v120, 4294901760
    %v122 = vsub.f32 %v120, %v121
    %v123 = vand.u32 %v122, 4294901760
    %124 = vmatmul.mubr.f32.gmra.mrb[0].mxu0 %v123
    %v125 = vpop.f32.mrb[0].mxu0
    %v126 = vadd.f32 %v34, %v125
    %v127 = vpop.f32.mrb[0].mxu0
    %128 = vdwg.mxu0
    %129 = vmatprep.subr.mxu0 0.0
    %v130 = vand.u32 %v21, 4294901760
    %v131 = vsub.f32 %v21, %v130
    %v132 = vand.u32 %v131, 4294901760
    %v133 = vsub.f32 %v131, %v132
    %v134 = vand.u32 %v133, 4294901760
    %135 = vmatpush1.msra.mxu0 %v134
    %136 = vmatprep.subr.mxu0 0.0
    %137 = vmatpush1.msra.mxu0 0.0
    %138 = vmatprep.subr.mxu0 0.0
    %139 = vmatpush1.msra.mxu0 0.0
    %140 = vmatprep.subr.mxu0 0.0
    %141 = vmatpush1.msra.mxu0 0.0
    %142 = vmatprep.subr.mxu0 0.0
    %143 = vmatpush1.msra.mxu0 0.0
    %144 = vmatprep.subr.mxu0 0.0
    %145 = vmatpush1.msra.mxu0 0.0
    %146 = vmatprep.subr.mxu0 0.0
    %147 = vmatpush1.msra.mxu0 0.0
    %148 = vmatprep.subr.mxu0 0.0
    %149 = vmatpush1.msra.mxu0 0.0
    %150 = vmatprep.subr.mxu0 0.0
    %151 = vmatpush1.msra.mxu0 0.0
    %152 = vmatprep.subr.mxu0 0.0
    %153 = vmatpush1.msra.mxu0 0.0
    %154 = vmatprep.subr.mxu0 0.0
    %155 = vmatpush1.msra.mxu0 0.0
    %156 = vmatprep.subr.mxu0 0.0
    %157 = vmatpush1.msra.mxu0 0.0
    %158 = vmatprep.subr.mxu0 0.0
    %159 = vmatpush1.msra.mxu0 0.0
    %160 = vmatprep.subr.mxu0 0.0
    %161 = vmatpush1.msra.mxu0 0.0
    %162 = vmatprep.subr.mxu0 0.0
    %163 = vmatpush1.msra.mxu0 0.0
    %164 = vmatprep.subr.mxu0 0.0
    %165 = vmatpush1.msra.mxu0 0.0
    %166 = vmatprep.subr.mxu0 0.0
    %167 = vmatpush1.msra.mxu0 0.0
    %168 = vmatprep.subr.mxu0 0.0
    %169 = vmatpush1.msra.mxu0 0.0
    %170 = vmatprep.subr.mxu0 0.0
    %171 = vmatpush1.msra.mxu0 0.0
    %172 = vmatprep.subr.mxu0 0.0
    %173 = vmatpush1.msra.mxu0 0.0
    %174 = vmatprep.subr.mxu0 0.0
    %175 = vmatpush1.msra.mxu0 0.0
    %176 = vmatprep.subr.mxu0 0.0
    %177 = vmatpush1.msra.mxu0 0.0
    %178 = vmatprep.subr.mxu0 0.0
    %179 = vmatpush1.msra.mxu0 0.0
    %180 = vmatprep.subr.mxu0 0.0
    %181 = vmatpush1.msra.mxu0 0.0
    %182 = vmatprep.subr.mxu0 0.0
    %183 = vmatpush1.msra.mxu0 0.0
    %184 = vmatprep.subr.mxu0 0.0
    %185 = vmatpush1.msra.mxu0 0.0
    %186 = vmatprep.subr.mxu0 0.0
    %187 = vmatpush1.msra.mxu0 0.0
    %188 = vmatprep.subr.mxu0 0.0
    %189 = vmatpush1.msra.mxu0 0.0
    %190 = vmatprep.subr.mxu0 0.0
    %191 = vmatpush1.msra.mxu0 0.0
    %192 = vmatprep.subr.mxu0 0.0
    %193 = vmatpush1.msra.mxu0 0.0
    %194 = vmatprep.subr.mxu0 0.0
    %195 = vmatpush1.msra.mxu0 0.0
    %196 = vmatprep.subr.mxu0 0.0
    %197 = vmatpush1.msra.mxu0 0.0
    %198 = vmatprep.mubr.f32.mxu0 0.0
    %v199 = vand.u32 %v38, 4294901760
    %200 = vmatmul.mubr.f32.gmra.mrb[0].mxu0 %v199
    %v201 = vpop.f32.mrb[0].mxu0
    %v202 = vadd.f32 %v116, %v201
    %v203 = vpop.f32.mrb[0].mxu0
    %204 = vmatprep.mubr.f32.mxu0 0.0
    %v205 = vand.u32 %v41, 4294901760
    %206 = vmatmul.mubr.f32.gmra.mrb[0].mxu0 %v205
    %v207 = vpop.f32.mrb[0].mxu0
    %v208 = vadd.f32 %v126, %v207
    %v209 = vpop.f32.mrb[0].mxu0
    %210 = vdwg.mxu0
    %211 = vmatprep.subr.mxu0 0.0
    %v212 = vand.u32 %v21, 4294901760
    %v213 = vsub.f32 %v21, %v212
    %214 = vmatpush1.msra.mxu0 %v213
    %215 = vmatprep.subr.mxu0 0.0
    %216 = vmatpush1.msra.mxu0 0.0
    %217 = vmatprep.subr.mxu0 0.0
    %218 = vmatpush1.msra.mxu0 0.0
    %219 = vmatprep.subr.mxu0 0.0
    %220 = vmatpush1.msra.mxu0 0.0
    %221 = vmatprep.subr.mxu0 0.0
    %222 = vmatpush1.msra.mxu0 0.0
    %223 = vmatprep.subr.mxu0 0.0
    %224 = vmatpush1.msra.mxu0 0.0
    %225 = vmatprep.subr.mxu0 0.0
    %226 = vmatpush1.msra.mxu0 0.0
    %227 = vmatprep.subr.mxu0 0.0
    %228 = vmatpush1.msra.mxu0 0.0
    %229 = vmatprep.subr.mxu0 0.0
    %230 = vmatpush1.msra.mxu0 0.0
    %231 = vmatprep.subr.mxu0 0.0
    %232 = vmatpush1.msra.mxu0 0.0
    %233 = vmatprep.subr.mxu0 0.0
    %234 = vmatpush1.msra.mxu0 0.0
    %235 = vmatprep.subr.mxu0 0.0
    %236 = vmatpush1.msra.mxu0 0.0
    %237 = vmatprep.subr.mxu0 0.0
    %238 = vmatpush1.msra.mxu0 0.0
    %239 = vmatprep.subr.mxu0 0.0
    %240 = vmatpush1.msra.mxu0 0.0
    %241 = vmatprep.subr.mxu0 0.0
    %242 = vmatpush1.msra.mxu0 0.0
    %243 = vmatprep.subr.mxu0 0.0
    %244 = vmatpush1.msra.mxu0 0.0
    %245 = vmatprep.subr.mxu0 0.0
    %246 = vmatpush1.msra.mxu0 0.0
    %247 = vmatprep.subr.mxu0 0.0
    %248 = vmatpush1.msra.mxu0 0.0
    %249 = vmatprep.subr.mxu0 0.0
    %250 = vmatpush1.msra.mxu0 0.0
    %251 = vmatprep.subr.mxu0 0.0
    %252 = vmatpush1.msra.mxu0 0.0
    %253 = vmatprep.subr.mxu0 0.0
    %254 = vmatpush1.msra.mxu0 0.0
    %255 = vmatprep.subr.mxu0 0.0
    %256 = vmatpush1.msra.mxu0 0.0
    %257 = vmatprep.subr.mxu0 0.0
    %258 = vmatpush1.msra.mxu0 0.0
    %259 = vmatprep.subr.mxu0 0.0
    %260 = vmatpush1.msra.mxu0 0.0
    %261 = vmatprep.subr.mxu0 0.0
    %262 = vmatpush1.msra.mxu0 0.0
    %263 = vmatprep.subr.mxu0 0.0
    %264 = vmatpush1.msra.mxu0 0.0
    %265 = vmatprep.subr.mxu0 0.0
    %266 = vmatpush1.msra.mxu0 0.0
    %267 = vmatprep.subr.mxu0 0.0
    %268 = vmatpush1.msra.mxu0 0.0
    %269 = vmatprep.subr.mxu0 0.0
    %270 = vmatpush1.msra.mxu0 0.0
    %271 = vmatprep.subr.mxu0 0.0
    %272 = vmatpush1.msra.mxu0 0.0
    %273 = vmatprep.subr.mxu0 0.0
    %274 = vmatpush1.msra.mxu0 0.0
    %275 = vmatprep.subr.mxu0 0.0
    %276 = vmatpush1.msra.mxu0 0.0
    %277 = vmatprep.mubr.f32.mxu0 0.0
    %v278 = vand.u32 %v38, 4294901760
    %v279 = vsub.f32 %v38, %v278
    %280 = vmatmul.mubr.f32.gmra.mrb[0].mxu0 %v279
    %v281 = vpop.f32.mrb[0].mxu0
    %v282 = vadd.f32 %v202, %v281
    %v283 = vpop.f32.mrb[0].mxu0
    %284 = vmatprep.mubr.f32.mxu0 0.0
    %v285 = vand.u32 %v41, 4294901760
    %v286 = vsub.f32 %v41, %v285
    %287 = vmatmul.mubr.f32.gmra.mrb[0].mxu0 %v286
    %v288 = vpop.f32.mrb[0].mxu0
    %v289 = vadd.f32 %v208, %v288
    %v290 = vpop.f32.mrb[0].mxu0
    %291 = vdwg.mxu0
    %292 = vmatprep.subr.mxu0 0.0
    %v293 = vand.u32 %v21, 4294901760
    %294 = vmatpush1.msra.mxu0 %v293
    %295 = vmatprep.subr.mxu0 0.0
    %296 = vmatpush1.msra.mxu0 0.0
    %297 = vmatprep.subr.mxu0 0.0
    %298 = vmatpush1.msra.mxu0 0.0
    %299 = vmatprep.subr.mxu0 0.0
    %300 = vmatpush1.msra.mxu0 0.0
    %301 = vmatprep.subr.mxu0 0.0
    %302 = vmatpush1.msra.mxu0 0.0
    %303 = vmatprep.subr.mxu0 0.0
    %304 = vmatpush1.msra.mxu0 0.0
    %305 = vmatprep.subr.mxu0 0.0
    %306 = vmatpush1.msra.mxu0 0.0
    %307 = vmatprep.subr.mxu0 0.0
    %308 = vmatpush1.msra.mxu0 0.0
    %309 = vmatprep.subr.mxu0 0.0
    %310 = vmatpush1.msra.mxu0 0.0
    %311 = vmatprep.subr.mxu0 0.0
    %312 = vmatpush1.msra.mxu0 0.0
    %313 = vmatprep.subr.mxu0 0.0
    %314 = vmatpush1.msra.mxu0 0.0
    %315 = vmatprep.subr.mxu0 0.0
    %316 = vmatpush1.msra.mxu0 0.0
    %317 = vmatprep.subr.mxu0 0.0
    %318 = vmatpush1.msra.mxu0 0.0
    %319 = vmatprep.subr.mxu0 0.0
    %320 = vmatpush1.msra.mxu0 0.0
    %321 = vmatprep.subr.mxu0 0.0
    %322 = vmatpush1.msra.mxu0 0.0
    %323 = vmatprep.subr.mxu0 0.0
    %324 = vmatpush1.msra.mxu0 0.0
    %325 = vmatprep.subr.mxu0 0.0
    %326 = vmatpush1.msra.mxu0 0.0
    %327 = vmatprep.subr.mxu0 0.0
    %328 = vmatpush1.msra.mxu0 0.0
    %329 = vmatprep.subr.mxu0 0.0
    %330 = vmatpush1.msra.mxu0 0.0
    %331 = vmatprep.subr.mxu0 0.0
    %332 = vmatpush1.msra.mxu0 0.0
    %333 = vmatprep.subr.mxu0 0.0
    %334 = vmatpush1.msra.mxu0 0.0
    %335 = vmatprep.subr.mxu0 0.0
    %336 = vmatpush1.msra.mxu0 0.0
    %337 = vmatprep.subr.mxu0 0.0
    %338 = vmatpush1.msra.mxu0 0.0
    %339 = vmatprep.subr.mxu0 0.0
    %340 = vmatpush1.msra.mxu0 0.0
    %341 = vmatprep.subr.mxu0 0.0
    %342 = vmatpush1.msra.mxu0 0.0
    %343 = vmatprep.subr.mxu0 0.0
    %344 = vmatpush1.msra.mxu0 0.0
    %345 = vmatprep.subr.mxu0 0.0
    %346 = vmatpush1.msra.mxu0 0.0
    %347 = vmatprep.subr.mxu0 0.0
    %348 = vmatpush1.msra.mxu0 0.0
    %349 = vmatprep.subr.mxu0 0.0
    %350 = vmatpush1.msra.mxu0 0.0
    %351 = vmatprep.subr.mxu0 0.0
    %352 = vmatpush1.msra.mxu0 0.0
    %353 = vmatprep.subr.mxu0 0.0
    %354 = vmatpush1.msra.mxu0 0.0
    %355 = vmatprep.subr.mxu0 0.0
    %356 = vmatpush1.msra.mxu0 0.0
    %357 = vmatprep.mubr.f32.mxu0 0.0
    %v358 = vand.u32 %v38, 4294901760
    %v359 = vsub.f32 %v38, %v358
    %v360 = vand.u32 %v359, 4294901760
    %361 = vmatmul.mubr.f32.gmra.mrb[0].mxu0 %v360
    %v362 = vpop.f32.mrb[0].mxu0
    %v363 = vadd.f32 %v282, %v362
    %v364 = vpop.f32.mrb[0].mxu0
    %365 = vmatprep.mubr.f32.mxu0 0.0
    %v366 = vand.u32 %v41, 4294901760
    %v367 = vsub.f32 %v41, %v366
    %v368 = vand.u32 %v367, 4294901760
    %369 = vmatmul.mubr.f32.gmra.mrb[0].mxu0 %v368
    %v370 = vpop.f32.mrb[0].mxu0
    %v371 = vadd.f32 %v289, %v370
    %v372 = vpop.f32.mrb[0].mxu0
    %373 = vdwg.mxu0
    %374 = vmatprep.subr.mxu0 0.0
    %v375 = vand.u32 %v21, 4294901760
    %v376 = vsub.f32 %v21, %v375
    %v377 = vand.u32 %v376, 4294901760
    %378 = vmatpush1.msra.mxu0 %v377
    %379 = vmatprep.subr.mxu0 0.0
    %380 = vmatpush1.msra.mxu0 0.0
    %381 = vmatprep.subr.mxu0 0.0
    %382 = vmatpush1.msra.mxu0 0.0
    %383 = vmatprep.subr.mxu0 0.0
    %384 = vmatpush1.msra.mxu0 0.0
    %385 = vmatprep.subr.mxu0 0.0
    %386 = vmatpush1.msra.mxu0 0.0
    %387 = vmatprep.subr.mxu0 0.0
    %388 = vmatpush1.msra.mxu0 0.0
    %389 = vmatprep.subr.mxu0 0.0
    %390 = vmatpush1.msra.mxu0 0.0
    %391 = vmatprep.subr.mxu0 0.0
    %392 = vmatpush1.msra.mxu0 0.0
    %393 = vmatprep.subr.mxu0 0.0
    %394 = vmatpush1.msra.mxu0 0.0
    %395 = vmatprep.subr.mxu0 0.0
    %396 = vmatpush1.msra.mxu0 0.0
    %397 = vmatprep.subr.mxu0 0.0
    %398 = vmatpush1.msra.mxu0 0.0
    %399 = vmatprep.subr.mxu0 0.0
    %400 = vmatpush1.msra.mxu0 0.0
    %401 = vmatprep.subr.mxu0 0.0
    %402 = vmatpush1.msra.mxu0 0.0
    %403 = vmatprep.subr.mxu0 0.0
    %404 = vmatpush1.msra.mxu0 0.0
    %405 = vmatprep.subr.mxu0 0.0
    %406 = vmatpush1.msra.mxu0 0.0
    %407 = vmatprep.subr.mxu0 0.0
    %408 = vmatpush1.msra.mxu0 0.0
    %409 = vmatprep.subr.mxu0 0.0
    %410 = vmatpush1.msra.mxu0 0.0
    %411 = vmatprep.subr.mxu0 0.0
    %412 = vmatpush1.msra.mxu0 0.0
    %413 = vmatprep.subr.mxu0 0.0
    %414 = vmatpush1.msra.mxu0 0.0
    %415 = vmatprep.subr.mxu0 0.0
    %416 = vmatpush1.msra.mxu0 0.0
    %417 = vmatprep.subr.mxu0 0.0
    %418 = vmatpush1.msra.mxu0 0.0
    %419 = vmatprep.subr.mxu0 0.0
    %420 = vmatpush1.msra.mxu0 0.0
    %421 = vmatprep.subr.mxu0 0.0
    %422 = vmatpush1.msra.mxu0 0.0
    %423 = vmatprep.subr.mxu0 0.0
    %424 = vmatpush1.msra.mxu0 0.0
    %425 = vmatprep.subr.mxu0 0.0
    %426 = vmatpush1.msra.mxu0 0.0
    %427 = vmatprep.subr.mxu0 0.0
    %428 = vmatpush1.msra.mxu0 0.0
    %429 = vmatprep.subr.mxu0 0.0
    %430 = vmatpush1.msra.mxu0 0.0
    %431 = vmatprep.subr.mxu0 0.0
    %432 = vmatpush1.msra.mxu0 0.0
    %433 = vmatprep.subr.mxu0 0.0
    %434 = vmatpush1.msra.mxu0 0.0
    %435 = vmatprep.subr.mxu0 0.0
    %436 = vmatpush1.msra.mxu0 0.0
    %437 = vmatprep.subr.mxu0 0.0
    %438 = vmatpush1.msra.mxu0 0.0
    %439 = vmatprep.subr.mxu0 0.0
    %440 = vmatpush1.msra.mxu0 0.0
    %441 = vmatprep.mubr.f32.mxu0 0.0
    %v442 = vand.u32 %v38, 4294901760
    %443 = vmatmul.mubr.f32.gmra.mrb[0].mxu0 %v442
    %v444 = vpop.f32.mrb[0].mxu0
    %v445 = vadd.f32 %v363, %v444
    %v446 = vpop.f32.mrb[0].mxu0
    %447 = vmatprep.mubr.f32.mxu0 0.0
    %v448 = vand.u32 %v41, 4294901760
    %449 = vmatmul.mubr.f32.gmra.mrb[0].mxu0 %v448
    %v450 = vpop.f32.mrb[0].mxu0
    %v451 = vadd.f32 %v371, %v450
    %v452 = vpop.f32.mrb[0].mxu0
    %453 = vdwg.mxu0
    %454 = vmatprep.subr.mxu0 0.0
    %v455 = vand.u32 %v21, 4294901760
    %456 = vmatpush1.msra.mxu0 %v455
    %457 = vmatprep.subr.mxu0 0.0
    %458 = vmatpush1.msra.mxu0 0.0
    %459 = vmatprep.subr.mxu0 0.0
    %460 = vmatpush1.msra.mxu0 0.0
    %461 = vmatprep.subr.mxu0 0.0
    %462 = vmatpush1.msra.mxu0 0.0
    %463 = vmatprep.subr.mxu0 0.0
    %464 = vmatpush1.msra.mxu0 0.0
    %465 = vmatprep.subr.mxu0 0.0
    %466 = vmatpush1.msra.mxu0 0.0
    %467 = vmatprep.subr.mxu0 0.0
    %468 = vmatpush1.msra.mxu0 0.0
    %469 = vmatprep.subr.mxu0 0.0
    %470 = vmatpush1.msra.mxu0 0.0
    %471 = vmatprep.subr.mxu0 0.0
    %472 = vmatpush1.msra.mxu0 0.0
    %473 = vmatprep.subr.mxu0 0.0
    %474 = vmatpush1.msra.mxu0 0.0
    %475 = vmatprep.subr.mxu0 0.0
    %476 = vmatpush1.msra.mxu0 0.0
    %477 = vmatprep.subr.mxu0 0.0
    %478 = vmatpush1.msra.mxu0 0.0
    %479 = vmatprep.subr.mxu0 0.0
    %480 = vmatpush1.msra.mxu0 0.0
    %481 = vmatprep.subr.mxu0 0.0
    %482 = vmatpush1.msra.mxu0 0.0
    %483 = vmatprep.subr.mxu0 0.0
    %484 = vmatpush1.msra.mxu0 0.0
    %485 = vmatprep.subr.mxu0 0.0
    %486 = vmatpush1.msra.mxu0 0.0
    %487 = vmatprep.subr.mxu0 0.0
    %488 = vmatpush1.msra.mxu0 0.0
    %489 = vmatprep.subr.mxu0 0.0
    %490 = vmatpush1.msra.mxu0 0.0
    %491 = vmatprep.subr.mxu0 0.0
    %492 = vmatpush1.msra.mxu0 0.0
    %493 = vmatprep.subr.mxu0 0.0
    %494 = vmatpush1.msra.mxu0 0.0
    %495 = vmatprep.subr.mxu0 0.0
    %496 = vmatpush1.msra.mxu0 0.0
    %497 = vmatprep.subr.mxu0 0.0
    %498 = vmatpush1.msra.mxu0 0.0
    %499 = vmatprep.subr.mxu0 0.0
    %500 = vmatpush1.msra.mxu0 0.0
    %501 = vmatprep.subr.mxu0 0.0
    %502 = vmatpush1.msra.mxu0 0.0
    %503 = vmatprep.subr.mxu0 0.0
    %504 = vmatpush1.msra.mxu0 0.0
    %505 = vmatprep.subr.mxu0 0.0
    %506 = vmatpush1.msra.mxu0 0.0
    %507 = vmatprep.subr.mxu0 0.0
    %508 = vmatpush1.msra.mxu0 0.0
    %509 = vmatprep.subr.mxu0 0.0
    %510 = vmatpush1.msra.mxu0 0.0
    %511 = vmatprep.subr.mxu0 0.0
    %512 = vmatpush1.msra.mxu0 0.0
    %513 = vmatprep.subr.mxu0 0.0
    %514 = vmatpush1.msra.mxu0 0.0
    %515 = vmatprep.subr.mxu0 0.0
    %516 = vmatpush1.msra.mxu0 0.0
    %517 = vmatprep.subr.mxu0 0.0
    %518 = vmatpush1.msra.mxu0 0.0
    %519 = vmatprep.mubr.f32.mxu0 0.0
    %v520 = vand.u32 %v38, 4294901760
    %521 = vmatmul.mubr.f32.gmra.mrb[0].mxu0 %v520
    %v522 = vpop.f32.mrb[0].mxu0
    %v523 = vadd.f32 %v445, %v522
    %v524 = vpop.f32.mrb[0].mxu0
    %525 = vmatprep.mubr.f32.mxu0 0.0
    %v526 = vand.u32 %v41, 4294901760
    %527 = vmatmul.mubr.f32.gmra.mrb[0].mxu0 %v526
    %v528 = vpop.f32.mrb[0].mxu0
    %v529 = vadd.f32 %v451, %v528
    %v530 = vpop.f32.mrb[0].mxu0
    %531 = vdwg.mxu0
    %v532 = vmax.f32 %v523, 0.0
    %v533 = vmax.f32 %v529, 0.0
    %v534 = vld [vmem:[%s3] sm:$0xff]
    %v535 = vld [vmem:[%s4] sm:$0xff]
    %537 = vset.pattern.permute.xlu0 0
    %538 = vperm.xlu0 %537, %v535
    %v539 = vpop.permute.xlu0 %538
    %vm541 = vcmask 130048
    %v543 = vsel %vm541, %v534, 0
    %545 = vmatprep.subr.mxu0 0.0
    %v546 = vand.u32 %v532, 4294901760
    %547 = vmatpush1.msra.mxu0 %v546
    %548 = vmatprep.subr.mxu0 0.0
    %v549 = vand.u32 %v533, 4294901760
    %550 = vmatpush1.msra.mxu0 %v549
    %551 = vmatprep.subr.mxu0 0.0
    %552 = vmatpush1.msra.mxu0 0.0
    %553 = vmatprep.subr.mxu0 0.0
    %554 = vmatpush1.msra.mxu0 0.0
    %555 = vmatprep.subr.mxu0 0.0
    %556 = vmatpush1.msra.mxu0 0.0
    %557 = vmatprep.subr.mxu0 0.0
    %558 = vmatpush1.msra.mxu0 0.0
    %559 = vmatprep.subr.mxu0 0.0
    %560 = vmatpush1.msra.mxu0 0.0
    %561 = vmatprep.subr.mxu0 0.0
    %562 = vmatpush1.msra.mxu0 0.0
    %563 = vmatprep.subr.mxu0 0.0
    %564 = vmatpush1.msra.mxu0 0.0
    %565 = vmatprep.subr.mxu0 0.0
    %566 = vmatpush1.msra.mxu0 0.0
    %567 = vmatprep.subr.mxu0 0.0
    %568 = vmatpush1.msra.mxu0 0.0
    %569 = vmatprep.subr.mxu0 0.0
    %570 = vmatpush1.msra.mxu0 0.0
    %571 = vmatprep.subr.mxu0 0.0
    %572 = vmatpush1.msra.mxu0 0.0
    %573 = vmatprep.subr.mxu0 0.0
    %574 = vmatpush1.msra.mxu0 0.0
    %575 = vmatprep.subr.mxu0 0.0
    %576 = vmatpush1.msra.mxu0 0.0
    %577 = vmatprep.subr.mxu0 0.0
    %578 = vmatpush1.msra.mxu0 0.0
    %579 = vmatprep.subr.mxu0 0.0
    %580 = vmatpush1.msra.mxu0 0.0
    %581 = vmatprep.subr.mxu0 0.0
    %582 = vmatpush1.msra.mxu0 0.0
    %583 = vmatprep.subr.mxu0 0.0
    %584 = vmatpush1.msra.mxu0 0.0
    %585 = vmatprep.subr.mxu0 0.0
    %586 = vmatpush1.msra.mxu0 0.0
    %587 = vmatprep.subr.mxu0 0.0
    %588 = vmatpush1.msra.mxu0 0.0
    %589 = vmatprep.subr.mxu0 0.0
    %590 = vmatpush1.msra.mxu0 0.0
    %591 = vmatprep.subr.mxu0 0.0
    %592 = vmatpush1.msra.mxu0 0.0
    %593 = vmatprep.subr.mxu0 0.0
    %594 = vmatpush1.msra.mxu0 0.0
    %595 = vmatprep.subr.mxu0 0.0
    %596 = vmatpush1.msra.mxu0 0.0
    %597 = vmatprep.subr.mxu0 0.0
    %598 = vmatpush1.msra.mxu0 0.0
    %599 = vmatprep.subr.mxu0 0.0
    %600 = vmatpush1.msra.mxu0 0.0
    %601 = vmatprep.subr.mxu0 0.0
    %602 = vmatpush1.msra.mxu0 0.0
    %603 = vmatprep.subr.mxu0 0.0
    %604 = vmatpush1.msra.mxu0 0.0
    %605 = vmatprep.subr.mxu0 0.0
    %606 = vmatpush1.msra.mxu0 0.0
    %607 = vmatprep.subr.mxu0 0.0
    %608 = vmatpush1.msra.mxu0 0.0
    %609 = vmatprep.subr.mxu0 0.0
    %610 = vmatpush1.msra.mxu0 0.0
    %611 = vmatprep.mubr.f32.mxu0 0.0
    %v612 = vand.u32 %v543, 4294901760
    %v613 = vsub.f32 %v543, %v612
    %v614 = vand.u32 %v613, 4294901760
    %v615 = vsub.f32 %v613, %v614
    %v616 = vand.u32 %v615, 4294901760
    %617 = vmatmul.mubr.f32.gmra.mrb[0].mxu0 %v616
    %v618 = vpop.f32.mrb[0].mxu0
    %v619 = vadd.f32 %v539, %v618
    %v620 = vpop.f32.mrb[0].mxu0
    %621 = vdwg.mxu0
    %622 = vmatprep.subr.mxu0 0.0
    %v623 = vand.u32 %v532, 4294901760
    %v624 = vsub.f32 %v532, %v623
    %v625 = vand.u32 %v624, 4294901760
    %v626 = vsub.f32 %v624, %v625
    %v627 = vand.u32 %v626, 4294901760
    %628 = vmatpush1.msra.mxu0 %v627
    %629 = vmatprep.subr.mxu0 0.0
    %v630 = vand.u32 %v533, 4294901760
    %v631 = vsub.f32 %v533, %v630
    %v632 = vand.u32 %v631, 4294901760
    %v633 = vsub.f32 %v631, %v632
    %v634 = vand.u32 %v633, 4294901760
    %635 = vmatpush1.msra.mxu0 %v634
    %636 = vmatprep.subr.mxu0 0.0
    %637 = vmatpush1.msra.mxu0 0.0
    %638 = vmatprep.subr.mxu0 0.0
    %639 = vmatpush1.msra.mxu0 0.0
    %640 = vmatprep.subr.mxu0 0.0
    %641 = vmatpush1.msra.mxu0 0.0
    %642 = vmatprep.subr.mxu0 0.0
    %643 = vmatpush1.msra.mxu0 0.0
    %644 = vmatprep.subr.mxu0 0.0
    %645 = vmatpush1.msra.mxu0 0.0
    %646 = vmatprep.subr.mxu0 0.0
    %647 = vmatpush1.msra.mxu0 0.0
    %648 = vmatprep.subr.mxu0 0.0
    %649 = vmatpush1.msra.mxu0 0.0
    %650 = vmatprep.subr.mxu0 0.0
    %651 = vmatpush1.msra.mxu0 0.0
    %652 = vmatprep.subr.mxu0 0.0
    %653 = vmatpush1.msra.mxu0 0.0
    %654 = vmatprep.subr.mxu0 0.0
    %655 = vmatpush1.msra.mxu0 0.0
    %656 = vmatprep.subr.mxu0 0.0
    %657 = vmatpush1.msra.mxu0 0.0
    %658 = vmatprep.subr.mxu0 0.0
    %659 = vmatpush1.msra.mxu0 0.0
    %660 = vmatprep.subr.mxu0 0.0
    %661 = vmatpush1.msra.mxu0 0.0
    %662 = vmatprep.subr.mxu0 0.0
    %663 = vmatpush1.msra.mxu0 0.0
    %664 = vmatprep.subr.mxu0 0.0
    %665 = vmatpush1.msra.mxu0 0.0
    %666 = vmatprep.subr.mxu0 0.0
    %667 = vmatpush1.msra.mxu0 0.0
    %668 = vmatprep.subr.mxu0 0.0
    %669 = vmatpush1.msra.mxu0 0.0
    %670 = vmatprep.subr.mxu0 0.0
    %671 = vmatpush1.msra.mxu0 0.0
    %672 = vmatprep.subr.mxu0 0.0
    %673 = vmatpush1.msra.mxu0 0.0
    %674 = vmatprep.subr.mxu0 0.0
    %675 = vmatpush1.msra.mxu0 0.0
    %676 = vmatprep.subr.mxu0 0.0
    %677 = vmatpush1.msra.mxu0 0.0
    %678 = vmatprep.subr.mxu0 0.0
    %679 = vmatpush1.msra.mxu0 0.0
    %680 = vmatprep.subr.mxu0 0.0
    %681 = vmatpush1.msra.mxu0 0.0
    %682 = vmatprep.subr.mxu0 0.0
    %683 = vmatpush1.msra.mxu0 0.0
    %684 = vmatprep.subr.mxu0 0.0
    %685 = vmatpush1.msra.mxu0 0.0
    %686 = vmatprep.subr.mxu0 0.0
    %687 = vmatpush1.msra.mxu0 0.0
    %688 = vmatprep.subr.mxu0 0.0
    %689 = vmatpush1.msra.mxu0 0.0
    %690 = vmatprep.subr.mxu0 0.0
    %691 = vmatpush1.msra.mxu0 0.0
    %692 = vmatprep.subr.mxu0 0.0
    %693 = vmatpush1.msra.mxu0 0.0
    %694 = vmatprep.subr.mxu0 0.0
    %695 = vmatpush1.msra.mxu0 0.0
    %696 = vmatprep.mubr.f32.mxu0 0.0
    %v697 = vand.u32 %v543, 4294901760
    %698 = vmatmul.mubr.f32.gmra.mrb[0].mxu0 %v697
    %v699 = vpop.f32.mrb[0].mxu0
    %v700 = vadd.f32 %v619, %v699
    %v701 = vpop.f32.mrb[0].mxu0
    %702 = vdwg.mxu0
    %703 = vmatprep.subr.mxu0 0.0
    %v704 = vand.u32 %v532, 4294901760
    %v705 = vsub.f32 %v532, %v704
    %706 = vmatpush1.msra.mxu0 %v705
    %707 = vmatprep.subr.mxu0 0.0
    %v708 = vand.u32 %v533, 4294901760
    %v709 = vsub.f32 %v533, %v708
    %710 = vmatpush1.msra.mxu0 %v709
    %711 = vmatprep.subr.mxu0 0.0
    %712 = vmatpush1.msra.mxu0 0.0
    %713 = vmatprep.subr.mxu0 0.0
    %714 = vmatpush1.msra.mxu0 0.0
    %715 = vmatprep.subr.mxu0 0.0
    %716 = vmatpush1.msra.mxu0 0.0
    %717 = vmatprep.subr.mxu0 0.0
    %718 = vmatpush1.msra.mxu0 0.0
    %719 = vmatprep.subr.mxu0 0.0
    %720 = vmatpush1.msra.mxu0 0.0
    %721 = vmatprep.subr.mxu0 0.0
    %722 = vmatpush1.msra.mxu0 0.0
    %723 = vmatprep.subr.mxu0 0.0
    %724 = vmatpush1.msra.mxu0 0.0
    %725 = vmatprep.subr.mxu0 0.0
    %726 = vmatpush1.msra.mxu0 0.0
    %727 = vmatprep.subr.mxu0 0.0
    %728 = vmatpush1.msra.mxu0 0.0
    %729 = vmatprep.subr.mxu0 0.0
    %730 = vmatpush1.msra.mxu0 0.0
    %731 = vmatprep.subr.mxu0 0.0
    %732 = vmatpush1.msra.mxu0 0.0
    %733 = vmatprep.subr.mxu0 0.0
    %734 = vmatpush1.msra.mxu0 0.0
    %735 = vmatprep.subr.mxu0 0.0
    %736 = vmatpush1.msra.mxu0 0.0
    %737 = vmatprep.subr.mxu0 0.0
    %738 = vmatpush1.msra.mxu0 0.0
    %739 = vmatprep.subr.mxu0 0.0
    %740 = vmatpush1.msra.mxu0 0.0
    %741 = vmatprep.subr.mxu0 0.0
    %742 = vmatpush1.msra.mxu0 0.0
    %743 = vmatprep.subr.mxu0 0.0
    %744 = vmatpush1.msra.mxu0 0.0
    %745 = vmatprep.subr.mxu0 0.0
    %746 = vmatpush1.msra.mxu0 0.0
    %747 = vmatprep.subr.mxu0 0.0
    %748 = vmatpush1.msra.mxu0 0.0
    %749 = vmatprep.subr.mxu0 0.0
    %750 = vmatpush1.msra.mxu0 0.0
    %751 = vmatprep.subr.mxu0 0.0
    %752 = vmatpush1.msra.mxu0 0.0
    %753 = vmatprep.subr.mxu0 0.0
    %754 = vmatpush1.msra.mxu0 0.0
    %755 = vmatprep.subr.mxu0 0.0
    %756 = vmatpush1.msra.mxu0 0.0
    %757 = vmatprep.subr.mxu0 0.0
    %758 = vmatpush1.msra.mxu0 0.0
    %759 = vmatprep.subr.mxu0 0.0
    %760 = vmatpush1.msra.mxu0 0.0
    %761 = vmatprep.subr.mxu0 0.0
    %762 = vmatpush1.msra.mxu0 0.0
    %763 = vmatprep.subr.mxu0 0.0
    %764 = vmatpush1.msra.mxu0 0.0
    %765 = vmatprep.subr.mxu0 0.0
    %766 = vmatpush1.msra.mxu0 0.0
    %767 = vmatprep.subr.mxu0 0.0
    %768 = vmatpush1.msra.mxu0 0.0
    %769 = vmatprep.subr.mxu0 0.0
    %770 = vmatpush1.msra.mxu0 0.0
    %771 = vmatprep.mubr.f32.mxu0 0.0
    %v772 = vand.u32 %v543, 4294901760
    %v773 = vsub.f32 %v543, %v772
    %774 = vmatmul.mubr.f32.gmra.mrb[0].mxu0 %v773
    %v775 = vpop.f32.mrb[0].mxu0
    %v776 = vadd.f32 %v700, %v775
    %v777 = vpop.f32.mrb[0].mxu0
    %778 = vdwg.mxu0
    %779 = vmatprep.subr.mxu0 0.0
    %v780 = vand.u32 %v532, 4294901760
    %781 = vmatpush1.msra.mxu0 %v780
    %782 = vmatprep.subr.mxu0 0.0
    %v783 = vand.u32 %v533, 4294901760
    %784 = vmatpush1.msra.mxu0 %v783
    %785 = vmatprep.subr.mxu0 0.0
    %786 = vmatpush1.msra.mxu0 0.0
    %787 = vmatprep.subr.mxu0 0.0
    %788 = vmatpush1.msra.mxu0 0.0
    %789 = vmatprep.subr.mxu0 0.0
    %790 = vmatpush1.msra.mxu0 0.0
    %791 = vmatprep.subr.mxu0 0.0
    %792 = vmatpush1.msra.mxu0 0.0
    %793 = vmatprep.subr.mxu0 0.0
    %794 = vmatpush1.msra.mxu0 0.0
    %795 = vmatprep.subr.mxu0 0.0
    %796 = vmatpush1.msra.mxu0 0.0
    %797 = vmatprep.subr.mxu0 0.0
    %798 = vmatpush1.msra.mxu0 0.0
    %799 = vmatprep.subr.mxu0 0.0
    %800 = vmatpush1.msra.mxu0 0.0
    %801 = vmatprep.subr.mxu0 0.0
    %802 = vmatpush1.msra.mxu0 0.0
    %803 = vmatprep.subr.mxu0 0.0
    %804 = vmatpush1.msra.mxu0 0.0
    %805 = vmatprep.subr.mxu0 0.0
    %806 = vmatpush1.msra.mxu0 0.0
    %807 = vmatprep.subr.mxu0 0.0
    %808 = vmatpush1.msra.mxu0 0.0
    %809 = vmatprep.subr.mxu0 0.0
    %810 = vmatpush1.msra.mxu0 0.0
    %811 = vmatprep.subr.mxu0 0.0
    %812 = vmatpush1.msra.mxu0 0.0
    %813 = vmatprep.subr.mxu0 0.0
    %814 = vmatpush1.msra.mxu0 0.0
    %815 = vmatprep.subr.mxu0 0.0
    %816 = vmatpush1.msra.mxu0 0.0
    %817 = vmatprep.subr.mxu0 0.0
    %818 = vmatpush1.msra.mxu0 0.0
    %819 = vmatprep.subr.mxu0 0.0
    %820 = vmatpush1.msra.mxu0 0.0
    %821 = vmatprep.subr.mxu0 0.0
    %822 = vmatpush1.msra.mxu0 0.0
    %823 = vmatprep.subr.mxu0 0.0
    %824 = vmatpush1.msra.mxu0 0.0
    %825 = vmatprep.subr.mxu0 0.0
    %826 = vmatpush1.msra.mxu0 0.0
    %827 = vmatprep.subr.mxu0 0.0
    %828 = vmatpush1.msra.mxu0 0.0
    %829 = vmatprep.subr.mxu0 0.0
    %830 = vmatpush1.msra.mxu0 0.0
    %831 = vmatprep.subr.mxu0 0.0
    %832 = vmatpush1.msra.mxu0 0.0
    %833 = vmatprep.subr.mxu0 0.0
    %834 = vmatpush1.msra.mxu0 0.0
    %835 = vmatprep.subr.mxu0 0.0
    %836 = vmatpush1.msra.mxu0 0.0
    %837 = vmatprep.subr.mxu0 0.0
    %838 = vmatpush1.msra.mxu0 0.0
    %839 = vmatprep.subr.mxu0 0.0
    %840 = vmatpush1.msra.mxu0 0.0
    %841 = vmatprep.subr.mxu0 0.0
    %842 = vmatpush1.msra.mxu0 0.0
    %843 = vmatprep.subr.mxu0 0.0
    %844 = vmatpush1.msra.mxu0 0.0
    %845 = vmatprep.mubr.f32.mxu0 0.0
    %v846 = vand.u32 %v543, 4294901760
    %v847 = vsub.f32 %v543, %v846
    %v848 = vand.u32 %v847, 4294901760
    %849 = vmatmul.mubr.f32.gmra.mrb[0].mxu0 %v848
    %v850 = vpop.f32.mrb[0].mxu0
    %v851 = vadd.f32 %v776, %v850
    %v852 = vpop.f32.mrb[0].mxu0
    %853 = vdwg.mxu0
    %854 = vmatprep.subr.mxu0 0.0
    %v855 = vand.u32 %v532, 4294901760
    %v856 = vsub.f32 %v532, %v855
    %v857 = vand.u32 %v856, 4294901760
    %858 = vmatpush1.msra.mxu0 %v857
    %859 = vmatprep.subr.mxu0 0.0
    %v860 = vand.u32 %v533, 4294901760
    %v861 = vsub.f32 %v533, %v860
    %v862 = vand.u32 %v861, 4294901760
    %863 = vmatpush1.msra.mxu0 %v862
    %864 = vmatprep.subr.mxu0 0.0
    %865 = vmatpush1.msra.mxu0 0.0
    %866 = vmatprep.subr.mxu0 0.0
    %867 = vmatpush1.msra.mxu0 0.0
    %868 = vmatprep.subr.mxu0 0.0
    %869 = vmatpush1.msra.mxu0 0.0
    %870 = vmatprep.subr.mxu0 0.0
    %871 = vmatpush1.msra.mxu0 0.0
    %872 = vmatprep.subr.mxu0 0.0
    %873 = vmatpush1.msra.mxu0 0.0
    %874 = vmatprep.subr.mxu0 0.0
    %875 = vmatpush1.msra.mxu0 0.0
    %876 = vmatprep.subr.mxu0 0.0
    %877 = vmatpush1.msra.mxu0 0.0
    %878 = vmatprep.subr.mxu0 0.0
    %879 = vmatpush1.msra.mxu0 0.0
    %880 = vmatprep.subr.mxu0 0.0
    %881 = vmatpush1.msra.mxu0 0.0
    %882 = vmatprep.subr.mxu0 0.0
    %883 = vmatpush1.msra.mxu0 0.0
    %884 = vmatprep.subr.mxu0 0.0
    %885 = vmatpush1.msra.mxu0 0.0
    %886 = vmatprep.subr.mxu0 0.0
    %887 = vmatpush1.msra.mxu0 0.0
    %888 = vmatprep.subr.mxu0 0.0
    %889 = vmatpush1.msra.mxu0 0.0
    %890 = vmatprep.subr.mxu0 0.0
    %891 = vmatpush1.msra.mxu0 0.0
    %892 = vmatprep.subr.mxu0 0.0
    %893 = vmatpush1.msra.mxu0 0.0
    %894 = vmatprep.subr.mxu0 0.0
    %895 = vmatpush1.msra.mxu0 0.0
    %896 = vmatprep.subr.mxu0 0.0
    %897 = vmatpush1.msra.mxu0 0.0
    %898 = vmatprep.subr.mxu0 0.0
    %899 = vmatpush1.msra.mxu0 0.0
    %900 = vmatprep.subr.mxu0 0.0
    %901 = vmatpush1.msra.mxu0 0.0
    %902 = vmatprep.subr.mxu0 0.0
    %903 = vmatpush1.msra.mxu0 0.0
    %904 = vmatprep.subr.mxu0 0.0
    %905 = vmatpush1.msra.mxu0 0.0
    %906 = vmatprep.subr.mxu0 0.0
    %907 = vmatpush1.msra.mxu0 0.0
    %908 = vmatprep.subr.mxu0 0.0
    %909 = vmatpush1.msra.mxu0 0.0
    %910 = vmatprep.subr.mxu0 0.0
    %911 = vmatpush1.msra.mxu0 0.0
    %912 = vmatprep.subr.mxu0 0.0
    %913 = vmatpush1.msra.mxu0 0.0
    %914 = vmatprep.subr.mxu0 0.0
    %915 = vmatpush1.msra.mxu0 0.0
    %916 = vmatprep.subr.mxu0 0.0
    %917 = vmatpush1.msra.mxu0 0.0
    %918 = vmatprep.subr.mxu0 0.0
    %919 = vmatpush1.msra.mxu0 0.0
    %920 = vmatprep.subr.mxu0 0.0
    %921 = vmatpush1.msra.mxu0 0.0
    %922 = vmatprep.subr.mxu0 0.0
    %923 = vmatpush1.msra.mxu0 0.0
    %924 = vmatprep.mubr.f32.mxu0 0.0
    %v925 = vand.u32 %v543, 4294901760
    %926 = vmatmul.mubr.f32.gmra.mrb[0].mxu0 %v925
    %v927 = vpop.f32.mrb[0].mxu0
    %v928 = vadd.f32 %v851, %v927
    %v929 = vpop.f32.mrb[0].mxu0
    %930 = vdwg.mxu0
    %931 = vmatprep.subr.mxu0 0.0
    %v932 = vand.u32 %v532, 4294901760
    %933 = vmatpush1.msra.mxu0 %v932
    %934 = vmatprep.subr.mxu0 0.0
    %v935 = vand.u32 %v533, 4294901760
    %936 = vmatpush1.msra.mxu0 %v935
    %937 = vmatprep.subr.mxu0 0.0
    %938 = vmatpush1.msra.mxu0 0.0
    %939 = vmatprep.subr.mxu0 0.0
    %940 = vmatpush1.msra.mxu0 0.0
    %941 = vmatprep.subr.mxu0 0.0
    %942 = vmatpush1.msra.mxu0 0.0
    %943 = vmatprep.subr.mxu0 0.0
    %944 = vmatpush1.msra.mxu0 0.0
    %945 = vmatprep.subr.mxu0 0.0
    %946 = vmatpush1.msra.mxu0 0.0
    %947 = vmatprep.subr.mxu0 0.0
    %948 = vmatpush1.msra.mxu0 0.0
    %949 = vmatprep.subr.mxu0 0.0
    %950 = vmatpush1.msra.mxu0 0.0
    %951 = vmatprep.subr.mxu0 0.0
    %952 = vmatpush1.msra.mxu0 0.0
    %953 = vmatprep.subr.mxu0 0.0
    %954 = vmatpush1.msra.mxu0 0.0
    %955 = vmatprep.subr.mxu0 0.0
    %956 = vmatpush1.msra.mxu0 0.0
    %957 = vmatprep.subr.mxu0 0.0
    %958 = vmatpush1.msra.mxu0 0.0
    %959 = vmatprep.subr.mxu0 0.0
    %960 = vmatpush1.msra.mxu0 0.0
    %961 = vmatprep.subr.mxu0 0.0
    %962 = vmatpush1.msra.mxu0 0.0
    %963 = vmatprep.subr.mxu0 0.0
    %964 = vmatpush1.msra.mxu0 0.0
    %965 = vmatprep.subr.mxu0 0.0
    %966 = vmatpush1.msra.mxu0 0.0
    %967 = vmatprep.subr.mxu0 0.0
    %968 = vmatpush1.msra.mxu0 0.0
    %969 = vmatprep.subr.mxu0 0.0
    %970 = vmatpush1.msra.mxu0 0.0
    %971 = vmatprep.subr.mxu0 0.0
    %972 = vmatpush1.msra.mxu0 0.0
    %973 = vmatprep.subr.mxu0 0.0
    %974 = vmatpush1.msra.mxu0 0.0
    %975 = vmatprep.subr.mxu0 0.0
    %976 = vmatpush1.msra.mxu0 0.0
    %977 = vmatprep.subr.mxu0 0.0
    %978 = vmatpush1.msra.mxu0 0.0
    %979 = vmatprep.subr.mxu0 0.0
    %980 = vmatpush1.msra.mxu0 0.0
    %981 = vmatprep.subr.mxu0 0.0
    %982 = vmatpush1.msra.mxu0 0.0
    %983 = vmatprep.subr.mxu0 0.0
    %984 = vmatpush1.msra.mxu0 0.0
    %985 = vmatprep.subr.mxu0 0.0
    %986 = vmatpush1.msra.mxu0 0.0
    %987 = vmatprep.subr.mxu0 0.0
    %988 = vmatpush1.msra.mxu0 0.0
    %989 = vmatprep.subr.mxu0 0.0
    %990 = vmatpush1.msra.mxu0 0.0
    %991 = vmatprep.subr.mxu0 0.0
    %992 = vmatpush1.msra.mxu0 0.0
    %993 = vmatprep.subr.mxu0 0.0
    %994 = vmatpush1.msra.mxu0 0.0
    %995 = vmatprep.subr.mxu0 0.0
    %996 = vmatpush1.msra.mxu0 0.0
    %997 = vmatprep.mubr.f32.mxu0 0.0
    %v998 = vand.u32 %v543, 4294901760
    %999 = vmatmul.mubr.f32.gmra.mrb[0].mxu0 %v998
    %v1000 = vpop.f32.mrb[0].mxu0
    %v1001 = vadd.f32 %v928, %v1000
    %v1002 = vpop.f32.mrb[0].mxu0
    %1003 = vdwg.mxu0
    %1004 = vst [vmem:[#allocation2] sm:$0xff] %v1001
    // Predicated region
    $region22: #{tpu_custom_call.1} parent=1 // pred_check
      _
    $region23: #{tpu_custom_call.1} parent=1 // pred_check_branch
      %1006 = sbr.rel (0) target = $region25
    $region24: #{tpu_custom_call.1} parent=1 // pred_region
      %s1008 = ssub.s32 128, 128
      %1009 = vsyncadd [#allocation3], %s1008
      %s1011 = sshll.u32 [#allocation2], 4
      %s1012 = int_to_ptr.vmem [resolvable:$true] %s1011
      %1014 = dma.vmem_to_hbm [thread:$0]  %s1012, 128, %s5, [#allocation3]
    $region25: #{tpu_custom_call.1} parent=1 // pred_fallthru
      _
    // Predicated region
    $region26: #{tpu_custom_call.1} parent=1 // pred_check
      _
    $region27: #{tpu_custom_call.1} parent=1 // pred_check_branch
      %1016 = sbr.rel (0) target = $region29
    $region28: #{tpu_custom_call.1} parent=1 // pred_region
      %1017 = dma.done [#allocation3], 128
    $region29: #{tpu_custom_call.1} parent=1 // pred_fallthru
      _
    %1018 = vsyncpa [#allocation3], 1

</llo_original>
